<compile_context>
chip_gen: v5e
topology: v5e:2x2
jax: 0.10.0
libtpu: 0.0.40
codegen_flags: <defaults>
</compile_context>

<pallas_src>
import functools

import jax
import jax.numpy as jnp
from jax.experimental import pallas as pl
from jax.experimental.pallas import tpu as pltpu

# SELU constants (match torch.nn.functional.selu)
_SELU_ALPHA = 1.6732632423543772848170429916717
_SELU_SCALE = 1.0507009873554804934193349852946
_LANE = 128
_MIN_SPLIT_ROWS = 256   # above this, force >=2 grid steps (v7x has 2 TCs)


def _selu(x):
    # exp only on the (clamped) negative branch: bounded EUP input, no inf.
    neg = _SELU_ALPHA * (jnp.exp(jnp.minimum(x, 0.0)) - 1.0)
    return _SELU_SCALE * jnp.where(x > 0, x, neg)


def _mlp_kernel(x_ref, w1_ref, b1_ref, w2_ref, b2_ref, w3_ref, b3_ref,
                out_ref, *, actor):
    # f32 activations come straight from HBM; cast to bf16 on the VPU right
    # before the MXU (hides under the activation DMA, no wrapper pre-pass).
    x = x_ref[...].astype(jnp.bfloat16)

    h1 = jnp.dot(x, w1_ref[...], preferred_element_type=jnp.float32)
    h1 = _selu(h1 + b1_ref[...])                       # b1: (1, h1p) broadcast

    h2 = jnp.dot(h1.astype(jnp.bfloat16), w2_ref[...],
                 preferred_element_type=jnp.float32)
    h2 = _selu(h2 + b2_ref[...])                       # b2: (1, h2p) broadcast

    y = jnp.dot(h2.astype(jnp.bfloat16), w3_ref[...],
                preferred_element_type=jnp.float32)
    y = y + b3_ref[...]                                # b3: (1, outp) broadcast
    if actor:
        y = jnp.tanh(y)

    out_ref[...] = y.astype(out_ref.dtype)


def _round_up(n, m):
    return ((n + m - 1) // m) * m


def init_params(key, input_dim, hidden_in_dim, hidden_out_dim, output_dim):
    """f32 params stored as [in, out] (transposed vs PyTorch's [out, in]).
    uniform(-1/sqrt(fan_in), ..) for fc1/fc2, uniform(-1e-3, 1e-3) for fc3."""
    ks = jax.random.split(key, 6)

    def uni(k, shape, lim):
        return jax.random.uniform(k, shape, jnp.float32, -lim, lim)

    lim1 = 1.0 / float(input_dim) ** 0.5
    lim2 = 1.0 / float(hidden_in_dim) ** 0.5
    lim3 = 1e-3
    return {
        "w1": uni(ks[0], (input_dim, hidden_in_dim), lim1),
        "b1": uni(ks[1], (1, hidden_in_dim), lim1),
        "w2": uni(ks[2], (hidden_in_dim, hidden_out_dim), lim2),
        "b2": uni(ks[3], (1, hidden_out_dim), lim2),
        "w3": uni(ks[4], (hidden_out_dim, output_dim), lim3),
        "b3": uni(ks[5], (1, output_dim), lim3),
    }


def prepare_params(params):
    """One-time prep: pad hidden/output dims to multiples of 128 (lane-dense)
    and cast weights to bf16. Biases stay f32 (tiny). Zero padding is exact."""
    def pad_cols(a, to):
        return jnp.pad(a, ((0, 0), (0, to - a.shape[1])))

    def pad_rows(a, to):
        return jnp.pad(a, ((0, to - a.shape[0]), (0, 0)))

    h1 = params["w1"].shape[1]
    h2 = params["w2"].shape[1]
    out_dim = params["w3"].shape[1]
    h1p, h2p, outp = (_round_up(d, _LANE) for d in (h1, h2, out_dim))

    return {
        "w1": pad_cols(params["w1"], h1p).astype(jnp.bfloat16),
        "b1": pad_cols(params["b1"], h1p).astype(jnp.float32),
        "w2": pad_cols(pad_rows(params["w2"], h1p), h2p).astype(jnp.bfloat16),
        "b2": pad_cols(params["b2"], h2p).astype(jnp.float32),
        "w3": pad_cols(pad_rows(params["w3"], h2p), outp).astype(jnp.bfloat16),
        "b3": pad_cols(params["b3"], outp).astype(jnp.float32),
        "out_dim": out_dim,
    }


def network_forward(x, prepared, *, actor=False, batch_tile=2048,
                    out_dtype=jnp.bfloat16, trim=True):
    """Pallas-fused forward of `Network`. x: [B, input_dim] f32.

    trim=True  -> returns [B, out_dim]
    trim=False -> returns the lane-dense [B, out_padded] slab (consumer slices
                  lazily; avoids an extra HBM pass over the output).
    """
    w1, b1 = prepared["w1"], prepared["b1"]
    w2, b2 = prepared["w2"], prepared["b2"]
    w3, b3 = prepared["w3"], prepared["b3"]
    out_dim = prepared["out_dim"]

    B, in_dim = x.shape
    h1p, h2p, outp = w1.shape[1], w2.shape[1], w3.shape[1]

    # Batch tile: multiple of 8 sublanes, capped by batch_tile. For medium and
    # larger batches force >=2 grid steps so v7x's two TensorCores both get
    # work ("parallel" batch axis); no-op on single-TC v5e/v6e.
    tb = min(_round_up(batch_tile, 8), _round_up(B, 8))
    if B >= _MIN_SPLIT_ROWS:
        tb = min(tb, _round_up(pl.cdiv(B, 2), 8))
    n_tiles = pl.cdiv(B, tb)

    def const(a):
        nd = a.ndim
        return pl.BlockSpec(a.shape, lambda i, nd=nd: (0,) * nd)

    flops = 2 * B * (in_dim * h1p + h1p * h2p + h2p * outp)
    transcendentals = B * (h1p + h2p + (outp if actor else 0))
    bytes_accessed = (x.size * jnp.dtype(x.dtype).itemsize
                      + (w1.size + w2.size + w3.size) * 2
                      + (b1.size + b2.size + b3.size) * 4
                      + B * outp * jnp.dtype(out_dtype).itemsize)

    kernel = functools.partial(_mlp_kernel, actor=actor)
    y = pl.pallas_call(
        kernel,
        out_shape=jax.ShapeDtypeStruct((B, outp), out_dtype),
        grid=(n_tiles,),
        in_specs=[pl.BlockSpec((tb, in_dim), lambda i: (i, 0)),
                  const(w1), const(b1), const(w2), const(b2),
                  const(w3), const(b3)],
        out_specs=pl.BlockSpec((tb, outp), lambda i: (i, 0)),
        compiler_params=pltpu.CompilerParams(
            dimension_semantics=("parallel",)),
        cost_estimate=pl.CostEstimate(
            flops=flops, transcendentals=transcendentals,
            bytes_accessed=bytes_accessed),
    )(x, w1, b1, w2, b2, w3, b3)

    return y[:, :out_dim] if trim else y


def _ref_forward(x, p, actor):
    """Pure-JAX reference mirroring the kernel's numerics (bf16 matmul operands,
    f32 accumulation/elementwise)."""
    def dot(a, b):
        return jnp.dot(a.astype(jnp.bfloat16), b.astype(jnp.bfloat16),
                       preferred_element_type=jnp.float32)

    h1 = _selu(dot(x, p["w1"]) + p["b1"])
    h2 = _selu(dot(h1, p["w2"]) + p["b2"])
    y = dot(h2, p["w3"]) + p["b3"]
    return jnp.tanh(y) if actor else y


if __name__ == "__main__":
    key = jax.random.PRNGKey(0)
    k_x, k_x2, k_p = jax.random.split(key, 3)

    # Small, module-consistent shapes: state -> hidden -> hidden -> action.
    B, input_dim, hidden_in_dim, hidden_out_dim, output_dim = 8, 32, 64, 64, 4

    x = jax.random.normal(k_x, (B, input_dim), jnp.float32)
    params = init_params(k_p, input_dim, hidden_in_dim, hidden_out_dim, output_dim)
    prepared = prepare_params(params)

    # Critic (raw fc3, f32 output) and actor (tanh head, default bf16 output).
    out_critic = jax.block_until_ready(
        network_forward(x, prepared, actor=False, out_dtype=jnp.float32))
    out_actor = jax.block_until_ready(network_forward(x, prepared, actor=True))

    ref_critic = _ref_forward(x, params, actor=False)
    ref_actor = _ref_forward(x, params, actor=True)

    assert out_critic.shape == (B, output_dim)
    assert out_actor.shape == (B, output_dim)
    assert jnp.allclose(out_critic, ref_critic, atol=1e-4, rtol=1e-2)
    assert jnp.allclose(out_actor.astype(jnp.float32), ref_actor,
                        atol=2e-3, rtol=2e-2)

    # Larger ragged batch: multi-step pipeline, masked final-block store
    # (1000 % 256 != 0), untrimmed lane-dense slab output.
    B2 = 1000
    x2 = jax.random.normal(k_x2, (B2, input_dim), jnp.float32)
    out2 = jax.block_until_ready(
        network_forward(x2, prepared, actor=True, batch_tile=256, trim=False))
    ref2 = _ref_forward(x2, params, actor=True)
    assert out2.shape == (B2, prepared["w3"].shape[1])
    assert jnp.allclose(out2[:, :output_dim].astype(jnp.float32), ref2,
                        atol=2e-3, rtol=2e-2)

    print("KERNEL_OK")
</pallas_src>

<mosaic_0001>
module attributes {stable_mosaic.version = 11 : i64} {
  func.func @_mlp_kernel(%arg0: i32, %arg1: memref<8x32xf32, #tpu.memory_space<vmem>>, %arg2: memref<32x128xbf16, #tpu.memory_space<vmem>>, %arg3: memref<1x128xf32, #tpu.memory_space<vmem>>, %arg4: memref<128x128xbf16, #tpu.memory_space<vmem>>, %arg5: memref<1x128xf32, #tpu.memory_space<vmem>>, %arg6: memref<128x128xbf16, #tpu.memory_space<vmem>>, %arg7: memref<1x128xf32, #tpu.memory_space<vmem>>, %arg8: memref<8x128xf32, #tpu.memory_space<vmem>>) attributes {dimension_semantics = [#tpu.dimension_semantics<parallel>], iteration_bounds = array<i64: 1>, scalar_prefetch = 0 : i64, scratch_operands = 0 : i64, tpu.core_type = #tpu.core_type<tc>, window_params = [{transform_indices = @transform_0, window_bounds = array<i64: 8, 32>}, {pipeline_mode = #tpu.pipeline_mode<synchronous>, transform_indices = @transform_1, window_bounds = array<i64: 32, 128>}, {pipeline_mode = #tpu.pipeline_mode<synchronous>, transform_indices = @transform_2, window_bounds = array<i64: 1, 128>}, {pipeline_mode = #tpu.pipeline_mode<synchronous>, transform_indices = @transform_3, window_bounds = array<i64: 128, 128>}, {pipeline_mode = #tpu.pipeline_mode<synchronous>, transform_indices = @transform_4, window_bounds = array<i64: 1, 128>}, {pipeline_mode = #tpu.pipeline_mode<synchronous>, transform_indices = @transform_5, window_bounds = array<i64: 128, 128>}, {pipeline_mode = #tpu.pipeline_mode<synchronous>, transform_indices = @transform_6, window_bounds = array<i64: 1, 128>}, {transform_indices = @transform_7, window_bounds = array<i64: 8, 128>}]} {
    %c0 = arith.constant 0 : index
    %c0_0 = arith.constant 0 : index
    %0 = vector.load %arg1[%c0, %c0_0] : memref<8x32xf32, #tpu.memory_space<vmem>>, vector<8x32xf32>
    %1 = arith.truncf %0 : vector<8x32xf32> to vector<8x32xbf16>
    %c0_1 = arith.constant 0 : index
    %c0_2 = arith.constant 0 : index
    %2 = vector.load %arg2[%c0_1, %c0_2] : memref<32x128xbf16, #tpu.memory_space<vmem>>, vector<32x128xbf16>
    %cst = arith.constant dense<0.000000e+00> : vector<8x128xf32>
    %3 = tpu.matmul %1, %2, %cst {dimension_numbers = #tpu.dot_dimension_numbers<[1], [0], [0], [1], [0, 0, 1, 1], [], []>} : vector<8x32xbf16>, vector<32x128xbf16>, vector<8x128xf32> -> vector<8x128xf32>
    %c0_3 = arith.constant 0 : index
    %c0_4 = arith.constant 0 : index
    %4 = vector.load %arg3[%c0_3, %c0_4] : memref<1x128xf32, #tpu.memory_space<vmem>>, vector<1x128xf32>
    %5 = vector.broadcast %4 : vector<1x128xf32> to vector<8x128xf32>
    %6 = arith.addf %3, %5 : vector<8x128xf32>
    %cst_5 = arith.constant 0.000000e+00 : f32
    %7 = vector.broadcast %cst_5 : f32 to vector<8x128xf32>
    %8 = arith.minimumf %6, %7 : vector<8x128xf32>
    %9 = math.exp %8 : vector<8x128xf32>
    %cst_6 = arith.constant 1.000000e+00 : f32
    %10 = vector.broadcast %cst_6 : f32 to vector<8x128xf32>
    %11 = arith.subf %9, %10 : vector<8x128xf32>
    %cst_7 = arith.constant 1.67326319 : f32
    %12 = vector.broadcast %cst_7 : f32 to vector<8x128xf32>
    %13 = arith.mulf %12, %11 : vector<8x128xf32>
    %cst_8 = arith.constant 0.000000e+00 : f32
    %14 = vector.broadcast %cst_8 : f32 to vector<8x128xf32>
    %15 = arith.cmpf ogt, %6, %14 : vector<8x128xf32>
    %16 = arith.select %15, %6, %13 : vector<8x128xi1>, vector<8x128xf32>
    %cst_9 = arith.constant 1.05070102 : f32
    %17 = vector.broadcast %cst_9 : f32 to vector<8x128xf32>
    %18 = arith.mulf %17, %16 : vector<8x128xf32>
    %19 = arith.truncf %18 : vector<8x128xf32> to vector<8x128xbf16>
    %c0_10 = arith.constant 0 : index
    %c0_11 = arith.constant 0 : index
    %20 = vector.load %arg4[%c0_10, %c0_11] : memref<128x128xbf16, #tpu.memory_space<vmem>>, vector<128x128xbf16>
    %cst_12 = arith.constant dense<0.000000e+00> : vector<8x128xf32>
    %21 = tpu.matmul %19, %20, %cst_12 {dimension_numbers = #tpu.dot_dimension_numbers<[1], [0], [0], [1], [0, 0, 1, 1], [], []>} : vector<8x128xbf16>, vector<128x128xbf16>, vector<8x128xf32> -> vector<8x128xf32>
    %c0_13 = arith.constant 0 : index
    %c0_14 = arith.constant 0 : index
    %22 = vector.load %arg5[%c0_13, %c0_14] : memref<1x128xf32, #tpu.memory_space<vmem>>, vector<1x128xf32>
    %23 = vector.broadcast %22 : vector<1x128xf32> to vector<8x128xf32>
    %24 = arith.addf %21, %23 : vector<8x128xf32>
    %cst_15 = arith.constant 0.000000e+00 : f32
    %25 = vector.broadcast %cst_15 : f32 to vector<8x128xf32>
    %26 = arith.minimumf %24, %25 : vector<8x128xf32>
    %27 = math.exp %26 : vector<8x128xf32>
    %cst_16 = arith.constant 1.000000e+00 : f32
    %28 = vector.broadcast %cst_16 : f32 to vector<8x128xf32>
    %29 = arith.subf %27, %28 : vector<8x128xf32>
    %cst_17 = arith.constant 1.67326319 : f32
    %30 = vector.broadcast %cst_17 : f32 to vector<8x128xf32>
    %31 = arith.mulf %30, %29 : vector<8x128xf32>
    %cst_18 = arith.constant 0.000000e+00 : f32
    %32 = vector.broadcast %cst_18 : f32 to vector<8x128xf32>
    %33 = arith.cmpf ogt, %24, %32 : vector<8x128xf32>
    %34 = arith.select %33, %24, %31 : vector<8x128xi1>, vector<8x128xf32>
    %cst_19 = arith.constant 1.05070102 : f32
    %35 = vector.broadcast %cst_19 : f32 to vector<8x128xf32>
    %36 = arith.mulf %35, %34 : vector<8x128xf32>
    %37 = arith.truncf %36 : vector<8x128xf32> to vector<8x128xbf16>
    %c0_20 = arith.constant 0 : index
    %c0_21 = arith.constant 0 : index
    %38 = vector.load %arg6[%c0_20, %c0_21] : memref<128x128xbf16, #tpu.memory_space<vmem>>, vector<128x128xbf16>
    %cst_22 = arith.constant dense<0.000000e+00> : vector<8x128xf32>
    %39 = tpu.matmul %37, %38, %cst_22 {dimension_numbers = #tpu.dot_dimension_numbers<[1], [0], [0], [1], [0, 0, 1, 1], [], []>} : vector<8x128xbf16>, vector<128x128xbf16>, vector<8x128xf32> -> vector<8x128xf32>
    %c0_23 = arith.constant 0 : index
    %c0_24 = arith.constant 0 : index
    %40 = vector.load %arg7[%c0_23, %c0_24] : memref<1x128xf32, #tpu.memory_space<vmem>>, vector<1x128xf32>
    %41 = vector.broadcast %40 : vector<1x128xf32> to vector<8x128xf32>
    %42 = arith.addf %39, %41 : vector<8x128xf32>
    %c0_25 = arith.constant 0 : index
    %c0_26 = arith.constant 0 : index
    %43 = vector.load %arg8[%c0_25, %c0_26] : memref<8x128xf32, #tpu.memory_space<vmem>>, vector<8x128xf32>
    tpu.vector_store %arg8[%c0_25, %c0_26], %42 {strides = array<i32>} : memref<8x128xf32, #tpu.memory_space<vmem>>, vector<8x128xf32>,
    return
  }
  func.func @transform_0(%arg0: i32) -> (i32, i32) {
    %c0_i32 = arith.constant 0 : i32
    %c0_i32_0 = arith.constant 0 : i32
    return %arg0, %c0_i32 : i32, i32
  }
  func.func @transform_1(%arg0: i32) -> (i32, i32) {
    %c0_i32 = arith.constant 0 : i32
    %c0_i32_0 = arith.constant 0 : i32
    %c0_i32_1 = arith.constant 0 : i32
    return %c0_i32, %c0_i32_0 : i32, i32
  }
  func.func @transform_2(%arg0: i32) -> (i32, i32) {
    %c0_i32 = arith.constant 0 : i32
    %c0_i32_0 = arith.constant 0 : i32
    %c0_i32_1 = arith.constant 0 : i32
    return %c0_i32, %c0_i32_0 : i32, i32
  }
  func.func @transform_3(%arg0: i32) -> (i32, i32) {
    %c0_i32 = arith.constant 0 : i32
    %c0_i32_0 = arith.constant 0 : i32
    %c0_i32_1 = arith.constant 0 : i32
    return %c0_i32, %c0_i32_0 : i32, i32
  }
  func.func @transform_4(%arg0: i32) -> (i32, i32) {
    %c0_i32 = arith.constant 0 : i32
    %c0_i32_0 = arith.constant 0 : i32
    %c0_i32_1 = arith.constant 0 : i32
    return %c0_i32, %c0_i32_0 : i32, i32
  }
  func.func @transform_5(%arg0: i32) -> (i32, i32) {
    %c0_i32 = arith.constant 0 : i32
    %c0_i32_0 = arith.constant 0 : i32
    %c0_i32_1 = arith.constant 0 : i32
    return %c0_i32, %c0_i32_0 : i32, i32
  }
  func.func @transform_6(%arg0: i32) -> (i32, i32) {
    %c0_i32 = arith.constant 0 : i32
    %c0_i32_0 = arith.constant 0 : i32
    %c0_i32_1 = arith.constant 0 : i32
    return %c0_i32, %c0_i32_0 : i32, i32
  }
  func.func @transform_7(%arg0: i32) -> (i32, i32) {
    %c0_i32 = arith.constant 0 : i32
    %c0_i32_0 = arith.constant 0 : i32
    return %arg0, %c0_i32 : i32, i32
  }
}

</mosaic_0001>

<llo_original>
// kernel: tpu_custom_call.1
$region0: #{tpu_custom_call.1}
  #allocation0 [shape = 'u32[]', space=smem, size = 0x4, offset = 0x4, fixed_abs, tag = 'smem constant byte address 0x4 - core index']
  #allocation1 [shape = 'u32[72,128]{1,0:T(1,128)}', space=vmem, size = 0x9000, scoped, tag = 'internal scratch']
  %s0 = inlined_call_operand.hbm [shape: f32[8,32], index: 0, kind: input, shape index: {}]
  %s1 = inlined_call_operand.hbm [shape: bf16[32,128], index: 1, kind: input, shape index: {}]
  %s2 = inlined_call_operand.vmem [shape: f32[1,128], index: 2, kind: input, shape index: {}]
  %s3 = inlined_call_operand.hbm [shape: bf16[128,128], index: 3, kind: input, shape index: {}]
  %s4 = inlined_call_operand.vmem [shape: f32[1,128], index: 4, kind: input, shape index: {}]
  %s5 = inlined_call_operand.hbm [shape: bf16[128,128], index: 5, kind: input, shape index: {}]
  %s6 = inlined_call_operand.vmem [shape: f32[1,128], index: 6, kind: input, shape index: {}]
  %s7 = inlined_call_operand.hbm [shape: f32[8,128], index: 7, kind: output, shape index: {}]
  %s8 = sld [smem:[#allocation0]]
  $region54: #{tpu_custom_call.1} parent=0
    _
  %s10 = ssub.s32 1, %s8
  %s11 = scalar_select 0, %s10, %s8
  $region1: #{tpu_custom_call.1} parent=0
    #allocation2 [shape = 'u8[4096]{0}', space=vmem, size = 0x1000, scoped, tag = 'input window, operand 0, single buffered']
    #allocation3 [shape = 's32[1]{0}', space=sflag, size = 0x4, scoped, tag = 'scoped memory for tpu_custom_call.1']
    #allocation4 [shape = 's32[1]{0}', space=sflag, size = 0x4, scoped, tag = 'scoped memory for tpu_custom_call.1']
    #allocation5 [shape = 'u8[8192]{0}', space=vmem, size = 0x2000, scoped, tag = 'input window, operand 1, single buffered']
    #allocation6 [shape = 's32[1]{0}', space=sflag, size = 0x4, scoped, tag = 'scoped memory for tpu_custom_call.1']
    #allocation7 [shape = 'u8[32768]{0}', space=vmem, size = 0x8000, scoped, tag = 'input window, operand 3, single buffered']
    #allocation8 [shape = 'u8[32768]{0}', space=vmem, size = 0x8000, scoped, tag = 'input window, operand 5, single buffered']
    #allocation9 [shape = 's32[1]{0}', space=sflag, size = 0x4, scoped, tag = 'scoped memory for tpu_custom_call.1']
    #allocation10 [shape = 'u8[4096]{0}', space=vmem, size = 0x1000, scoped, tag = 'output window, operand 0, single buffered']
    %12 = vsyncpa [#allocation3], 0
    %13 = vsyncpa [#allocation6], 0
    %14 = vsyncpa [#allocation9], 0
    %15 = vsyncpa [#allocation4], 0
    // Predicated region
    $region2: #{tpu_custom_call.1} parent=1 // pred_check
      _
    $region3: #{tpu_custom_call.1} parent=1 // pred_check_branch
      %17 = sbr.rel (0) target = $region5
    $region4: #{tpu_custom_call.1} parent=1 // pred_region
      %19 = vsyncadd [#allocation3], 0
      %s21 = sshll.u32 %s0, 4
      %s22 = int_to_ptr.hbm [resolvable:$true] %s21
      %s23 = sshll.u32 [#allocation2], 4
      %s24 = int_to_ptr.vmem [resolvable:$true] %s23
      %26 = dma.hbm_to_vmem [thread:$0]  %s22, 128, %s24, [#allocation3]
    $region5: #{tpu_custom_call.1} parent=1 // pred_fallthru
      _
    // Predicated region
    $region6: #{tpu_custom_call.1} parent=1 // pred_check
      _
    $region7: #{tpu_custom_call.1} parent=1 // pred_check_branch
      %28 = sbr.rel (0) target = $region9
    $region8: #{tpu_custom_call.1} parent=1 // pred_region
      %30 = vsyncadd [#allocation6], 0
      %s31 = sshll.u32 %s1, 4
      %s32 = int_to_ptr.hbm [resolvable:$true] %s31
      %s33 = sshll.u32 [#allocation5], 4
      %s34 = int_to_ptr.vmem [resolvable:$true] %s33
      %39 = dma.hbm_to_vmem [thread:$0]  %s32, 256, %s34, [#allocation6], 64, 64, 4
    $region9: #{tpu_custom_call.1} parent=1 // pred_fallthru
      _
    // Predicated region
    $region10: #{tpu_custom_call.1} parent=1 // pred_check
      _
    $region11: #{tpu_custom_call.1} parent=1 // pred_check_branch
      %41 = sbr.rel (0) target = $region13
    $region12: #{tpu_custom_call.1} parent=1 // pred_region
      _
    $region13: #{tpu_custom_call.1} parent=1 // pred_fallthru
      _
    // Predicated region
    $region14: #{tpu_custom_call.1} parent=1 // pred_check
      _
    $region15: #{tpu_custom_call.1} parent=1 // pred_check_branch
      %43 = sbr.rel (0) target = $region17
    $region16: #{tpu_custom_call.1} parent=1 // pred_region
      %45 = vsyncadd [#allocation6], 0
      %s46 = sshll.u32 %s3, 4
      %s47 = int_to_ptr.hbm [resolvable:$true] %s46
      %s48 = sshll.u32 [#allocation7], 4
      %s49 = int_to_ptr.vmem [resolvable:$true] %s48
      %54 = dma.hbm_to_vmem [thread:$0]  %s47, 1024, %s49, [#allocation6], 64, 64, 4
    $region17: #{tpu_custom_call.1} parent=1 // pred_fallthru
      _
    // Predicated region
    $region18: #{tpu_custom_call.1} parent=1 // pred_check
      _
    $region19: #{tpu_custom_call.1} parent=1 // pred_check_branch
      %56 = sbr.rel (0) target = $region21
    $region20: #{tpu_custom_call.1} parent=1 // pred_region
      _
    $region21: #{tpu_custom_call.1} parent=1 // pred_fallthru
      _
    // Predicated region
    $region22: #{tpu_custom_call.1} parent=1 // pred_check
      _
    $region23: #{tpu_custom_call.1} parent=1 // pred_check_branch
      %58 = sbr.rel (0) target = $region25
    $region24: #{tpu_custom_call.1} parent=1 // pred_region
      %60 = vsyncadd [#allocation9], 0
      %s61 = sshll.u32 %s5, 4
      %s62 = int_to_ptr.hbm [resolvable:$true] %s61
      %s63 = sshll.u32 [#allocation8], 4
      %s64 = int_to_ptr.vmem [resolvable:$true] %s63
      %69 = dma.hbm_to_vmem [thread:$0]  %s62, 1024, %s64, [#allocation9], 64, 64, 4
    $region25: #{tpu_custom_call.1} parent=1 // pred_fallthru
      _
    // Predicated region
    $region26: #{tpu_custom_call.1} parent=1 // pred_check
      _
    $region27: #{tpu_custom_call.1} parent=1 // pred_check_branch
      %71 = sbr.rel (0) target = $region29
    $region28: #{tpu_custom_call.1} parent=1 // pred_region
      _
    $region29: #{tpu_custom_call.1} parent=1 // pred_fallthru
      _
    // Predicated region
    $region30: #{tpu_custom_call.1} parent=1 // pred_check
      _
    $region31: #{tpu_custom_call.1} parent=1 // pred_check_branch
      %73 = sbr.rel (0) target = $region33
    $region32: #{tpu_custom_call.1} parent=1 // pred_region
      %75 = dma.done [#allocation3], 128
    $region33: #{tpu_custom_call.1} parent=1 // pred_fallthru
      _
    // Predicated region
    $region34: #{tpu_custom_call.1} parent=1 // pred_check
      _
    $region35: #{tpu_custom_call.1} parent=1 // pred_check_branch
      %77 = sbr.rel (0) target = $region37
    $region36: #{tpu_custom_call.1} parent=1 // pred_region
      %79 = dma.done [#allocation6], 256
    $region37: #{tpu_custom_call.1} parent=1 // pred_fallthru
      _
    // Predicated region
    $region38: #{tpu_custom_call.1} parent=1 // pred_check
      _
    $region39: #{tpu_custom_call.1} parent=1 // pred_check_branch
      %81 = sbr.rel (0) target = $region41
    $region40: #{tpu_custom_call.1} parent=1 // pred_region
      %83 = dma.done [#allocation6], 1024
    $region41: #{tpu_custom_call.1} parent=1 // pred_fallthru
      _
    // Predicated region
    $region42: #{tpu_custom_call.1} parent=1 // pred_check
      _
    $region43: #{tpu_custom_call.1} parent=1 // pred_check_branch
      %85 = sbr.rel (0) target = $region45
    $region44: #{tpu_custom_call.1} parent=1 // pred_region
      %87 = dma.done [#allocation9], 1024
    $region45: #{tpu_custom_call.1} parent=1 // pred_fallthru
      _
    %v89 = vld [vmem:[#allocation2] sm:$0xff]
    %v90 = vpack.c.bf16 %v89, %v89
    %v91 = vld [vmem:[#allocation5] sm:$0xf]
    %v92 = vld [vmem:[#allocation5 + $0x4] sm:$0xf]
    %v93 = vld [vmem:[#allocation5 + $0x8] sm:$0xf]
    %v94 = vld [vmem:[#allocation5 + $0xc] sm:$0xf]
    %v95 = vld [vmem:[%s2] sm:$0x1]
    %v97 = vperm.slane %v95, 0
    %v103 = vunpack.c.l.b16 %v91
    %v104 = vunpack.c.l.b16 %v92
    %v105 = vunpack.c.l.b16 %v93
    %v106 = vunpack.c.l.b16 %v94
    %v107 = vpack.c.b16 %v104, %v103
    %v108 = vpack.c.b16 %v106, %v105
    %vm111 = vcmask 261120
    %v113 = vsel %vm111, %v90, 0
    %115 = vmatpush.bf16.msra.mxu0 0
    %116 = vmatpush.bf16.msra.mxu0 0
    %117 = vmatpush.bf16.msra.mxu0 0
    %118 = vmatpush.bf16.msra.mxu0 0
    %119 = vmatpush.bf16.msra.mxu0 0
    %120 = vmatpush.bf16.msra.mxu0 0
    %121 = vmatpush.bf16.msra.mxu0 %v108
    %122 = vmatpush.bf16.msra.mxu0 %v107
    %123 = vmatmul.bf16.gmra.mxu0 %v113
    %v124 = vpop.f32.mrf.mxu0
    %v125 = vadd.f32 %v97, %v124
    %v126 = vpop.f32.mrf.mxu0
    %127 = vdwg.mxu0
    %v128 = vmin.f32 %v125, 0.0
    %v129 = vmul.f32 %v128, 1.442695
    %v130 = vpow.pop %v129
    %v131 = vsub.f32 %v130, 1.0
    %v132 = vmul.f32 %v131, 1.6732632
    %vm133 = vcmp.gt.f32.partialorder %v125, 0.0
    %v134 = vsel %vm133, %v125, %v132
    %v135 = vmul.f32 %v134, 1.050701
    %v136 = vpack.c.bf16 %v135, %v135
    %v137 = vld [vmem:[#allocation7] sm:$0xf]
    %v138 = vld [vmem:[#allocation7 + $0x4] sm:$0xf]
    %v139 = vld [vmem:[#allocation7 + $0x8] sm:$0xf]
    %v140 = vld [vmem:[#allocation7 + $0xc] sm:$0xf]
    %v141 = vld [vmem:[#allocation7 + $0x10] sm:$0xf]
    %v142 = vld [vmem:[#allocation7 + $0x14] sm:$0xf]
    %v143 = vld [vmem:[#allocation7 + $0x18] sm:$0xf]
    %v144 = vld [vmem:[#allocation7 + $0x1c] sm:$0xf]
    %v145 = vld [vmem:[#allocation7 + $0x20] sm:$0xf]
    %v146 = vld [vmem:[#allocation7 + $0x24] sm:$0xf]
    %v147 = vld [vmem:[#allocation7 + $0x28] sm:$0xf]
    %v148 = vld [vmem:[#allocation7 + $0x2c] sm:$0xf]
    %v149 = vld [vmem:[#allocation7 + $0x30] sm:$0xf]
    %v150 = vld [vmem:[#allocation7 + $0x34] sm:$0xf]
    %v151 = vld [vmem:[#allocation7 + $0x38] sm:$0xf]
    %v152 = vld [vmem:[#allocation7 + $0x3c] sm:$0xf]
    %v153 = vld [vmem:[%s4] sm:$0x1]
    %v155 = vperm.slane %v153, 0
    %v173 = vunpack.c.l.b16 %v137
    %v174 = vunpack.c.l.b16 %v138
    %v175 = vunpack.c.l.b16 %v139
    %v176 = vunpack.c.l.b16 %v140
    %v177 = vunpack.c.l.b16 %v141
    %v178 = vunpack.c.l.b16 %v142
    %v179 = vunpack.c.l.b16 %v143
    %v180 = vunpack.c.l.b16 %v144
    %v181 = vunpack.c.l.b16 %v145
    %v182 = vunpack.c.l.b16 %v146
    %v183 = vunpack.c.l.b16 %v147
    %v184 = vunpack.c.l.b16 %v148
    %v185 = vunpack.c.l.b16 %v149
    %v186 = vunpack.c.l.b16 %v150
    %v187 = vunpack.c.l.b16 %v151
    %v188 = vunpack.c.l.b16 %v152
    %v189 = vpack.c.b16 %v174, %v173
    %v190 = vpack.c.b16 %v176, %v175
    %v191 = vpack.c.b16 %v178, %v177
    %v192 = vpack.c.b16 %v180, %v179
    %v193 = vpack.c.b16 %v182, %v181
    %v194 = vpack.c.b16 %v184, %v183
    %v195 = vpack.c.b16 %v186, %v185
    %v196 = vpack.c.b16 %v188, %v187
    %205 = vmatpush.bf16.msra.mxu0 %v196
    %206 = vmatpush.bf16.msra.mxu0 %v195
    %207 = vmatpush.bf16.msra.mxu0 %v194
    %208 = vmatpush.bf16.msra.mxu0 %v193
    %209 = vmatpush.bf16.msra.mxu0 %v192
    %210 = vmatpush.bf16.msra.mxu0 %v191
    %211 = vmatpush.bf16.msra.mxu0 %v190
    %212 = vmatpush.bf16.msra.mxu0 %v189
    %213 = vmatmul.bf16.gmra.mxu0 %v136
    %v214 = vpop.f32.mrf.mxu0
    %v215 = vadd.f32 %v155, %v214
    %v216 = vpop.f32.mrf.mxu0
    %217 = vdwg.mxu0
    %v218 = vmin.f32 %v215, 0.0
    %v219 = vmul.f32 %v218, 1.442695
    %v220 = vpow.pop %v219
    %v221 = vsub.f32 %v220, 1.0
    %v222 = vmul.f32 %v221, 1.6732632
    %vm223 = vcmp.gt.f32.partialorder %v215, 0.0
    %v224 = vsel %vm223, %v215, %v222
    %v225 = vmul.f32 %v224, 1.050701
    %v226 = vpack.c.bf16 %v225, %v225
    %v227 = vld [vmem:[#allocation8] sm:$0xf]
    %v228 = vld [vmem:[#allocation8 + $0x4] sm:$0xf]
    %v229 = vld [vmem:[#allocation8 + $0x8] sm:$0xf]
    %v230 = vld [vmem:[#allocation8 + $0xc] sm:$0xf]
    %v231 = vld [vmem:[#allocation8 + $0x10] sm:$0xf]
    %v232 = vld [vmem:[#allocation8 + $0x14] sm:$0xf]
    %v233 = vld [vmem:[#allocation8 + $0x18] sm:$0xf]
    %v234 = vld [vmem:[#allocation8 + $0x1c] sm:$0xf]
    %v235 = vld [vmem:[#allocation8 + $0x20] sm:$0xf]
    %v236 = vld [vmem:[#allocation8 + $0x24] sm:$0xf]
    %v237 = vld [vmem:[#allocation8 + $0x28] sm:$0xf]
    %v238 = vld [vmem:[#allocation8 + $0x2c] sm:$0xf]
    %v239 = vld [vmem:[#allocation8 + $0x30] sm:$0xf]
    %v240 = vld [vmem:[#allocation8 + $0x34] sm:$0xf]
    %v241 = vld [vmem:[#allocation8 + $0x38] sm:$0xf]
    %v242 = vld [vmem:[#allocation8 + $0x3c] sm:$0xf]
    %v243 = vld [vmem:[%s6] sm:$0x1]
    %v245 = vperm.slane %v243, 0
    %v263 = vunpack.c.l.b16 %v227
    %v264 = vunpack.c.l.b16 %v228
    %v265 = vunpack.c.l.b16 %v229
    %v266 = vunpack.c.l.b16 %v230
    %v267 = vunpack.c.l.b16 %v231
    %v268 = vunpack.c.l.b16 %v232
    %v269 = vunpack.c.l.b16 %v233
    %v270 = vunpack.c.l.b16 %v234
    %v271 = vunpack.c.l.b16 %v235
    %v272 = vunpack.c.l.b16 %v236
    %v273 = vunpack.c.l.b16 %v237
    %v274 = vunpack.c.l.b16 %v238
    %v275 = vunpack.c.l.b16 %v239
    %v276 = vunpack.c.l.b16 %v240
    %v277 = vunpack.c.l.b16 %v241
    %v278 = vunpack.c.l.b16 %v242
    %v279 = vpack.c.b16 %v264, %v263
    %v280 = vpack.c.b16 %v266, %v265
    %v281 = vpack.c.b16 %v268, %v267
    %v282 = vpack.c.b16 %v270, %v269
    %v283 = vpack.c.b16 %v272, %v271
    %v284 = vpack.c.b16 %v274, %v273
    %v285 = vpack.c.b16 %v276, %v275
    %v286 = vpack.c.b16 %v278, %v277
    %295 = vmatpush.bf16.msra.mxu0 %v286
    %296 = vmatpush.bf16.msra.mxu0 %v285
    %297 = vmatpush.bf16.msra.mxu0 %v284
    %298 = vmatpush.bf16.msra.mxu0 %v283
    %299 = vmatpush.bf16.msra.mxu0 %v282
    %300 = vmatpush.bf16.msra.mxu0 %v281
    %301 = vmatpush.bf16.msra.mxu0 %v280
    %302 = vmatpush.bf16.msra.mxu0 %v279
    %303 = vmatmul.bf16.gmra.mxu0 %v226
    %v304 = vpop.f32.mrf.mxu0
    %v305 = vadd.f32 %v245, %v304
    %v306 = vpop.f32.mrf.mxu0
    %307 = vdwg.mxu0
    %308 = vst [vmem:[#allocation10] sm:$0xff] %v305
    // Predicated region
    $region46: #{tpu_custom_call.1} parent=1 // pred_check
      _
    $region47: #{tpu_custom_call.1} parent=1 // pred_check_branch
      %310 = sbr.rel (0) target = $region49
    $region48: #{tpu_custom_call.1} parent=1 // pred_region
      %312 = vsyncadd [#allocation4], 0
      %s314 = sshll.u32 [#allocation10], 4
      %s315 = int_to_ptr.vmem [resolvable:$true] %s314
      %s316 = sshll.u32 %s7, 4
      %s317 = int_to_ptr.hbm [resolvable:$true] %s316
      %319 = dma.vmem_to_hbm [thread:$0]  %s315, 128, %s317, [#allocation4]
    $region49: #{tpu_custom_call.1} parent=1 // pred_fallthru
      _
    // Predicated region
    $region50: #{tpu_custom_call.1} parent=1 // pred_check
      _
    $region51: #{tpu_custom_call.1} parent=1 // pred_check_branch
      %321 = sbr.rel (0) target = $region53
    $region52: #{tpu_custom_call.1} parent=1 // pred_region
      %323 = dma.done [#allocation4], 128
    $region53: #{tpu_custom_call.1} parent=1 // pred_fallthru
      _
    %324 = vsyncpa [#allocation3], 1
    %325 = vsyncpa [#allocation6], 1
    %326 = vsyncpa [#allocation9], 1
    %327 = vsyncpa [#allocation4], 1

</llo_original>
